<compile_context>
chip_gen: v7x
topology: tpu7x:2x2x1
jax: 0.10.0
libtpu: 0.0.40
codegen_flags: <defaults>
</compile_context>

<pallas_src>
import numpy as np
import jax
import jax.numpy as jnp
from jax.experimental import pallas as pl
from jax.experimental.pallas import tpu as pltpu


# ----------------------------- Pallas kernel -------------------------------

def _make_fused_kernel(shifts, pad, p_len, c_in):
    """Fused conv(3x3,pad=1)+bias+ReLU -> global-avg-pool -> linear head.

    x_ref   : (C, pad + P + pad) zero-extended, spatially padded, flattened
              input; column p = n*(H+2)*(W+2) + h'*(W+2) + w'.
    w_ref   : (Cout, K_PAD) conv weights, tap-major [(kh*3+kw)*C + c], with the
              conv bias in column 9*C and zero padding up to K_PAD.
    pool_ref: (P, N) selector of interior positions, 1/(H*W) folded in.
    fcw_ref : (num_classes, Cout + 1) fc weights with bias as last column.
    o_ref   : (num_classes, N) transposed logits (wrapper transposes back).
    stack_ref: (K_PAD, P) VMEM scratch holding the stacked conv operand.
    """
    k_taps = len(shifts) * c_in                     # 9*C = 36
    k_pad = ((k_taps + 1 + 7) // 8) * 8             # 40 (bias row, x8 aligned)

    def kernel(x_ref, w_ref, pool_ref, fcw_ref, o_ref, stack_ref):
        # Build the (K_PAD, P) conv operand: 9 shifted (C, P) lane-dense
        # slices stacked along K, a ones row (folds conv bias into the
        # matmul) and explicit zero rows (no uninitialized VMEM in the dot).
        for t, s in enumerate(shifts):              # static, unrolled taps
            lo = pad + s
            stack_ref[t * c_in:(t + 1) * c_in, :] = x_ref[:, lo:lo + p_len]
        stack_ref[k_taps:k_taps + 1, :] = jnp.ones((1, p_len), jnp.float32)
        stack_ref[k_taps + 1:k_pad, :] = jnp.zeros(
            (k_pad - k_taps - 1, p_len), jnp.float32)

        # ONE K=K_PAD MXU matmul (conv + bias), ReLU fused on the VPU.
        conv_t = jnp.maximum(
            jnp.dot(w_ref[...], stack_ref[...],
                    preferred_element_type=jnp.float32), 0.0)    # (Cout, P)
        # NOTE: halo columns of conv_t contain cross-sample garbage by design;
        # the pool selector zeroes them and they are never read elsewhere.

        # Global average pool as an MXU matmul (1/(H*W) folded into pool_ref).
        pooled = jnp.dot(conv_t, pool_ref[...],
                         preferred_element_type=jnp.float32)     # (Cout, N)

        # FC head; bias is the last column of fcw_ref.
        cout = fcw_ref.shape[1] - 1
        logits_t = (jnp.dot(fcw_ref[:, :cout], pooled,
                            preferred_element_type=jnp.float32)
                    + fcw_ref[:, cout:cout + 1])
        o_ref[...] = logits_t.astype(o_ref.dtype)                # (classes, N)

    return kernel


# ------------------------------ JAX wrapper --------------------------------

def model_wrapper_forward(x, params):
    """Equivalent of ModelWrapper(model)(x) for the synthetic conv model."""
    conv_w, conv_b, fc_w, fc_b = params
    N, C, H, W = x.shape
    Cout = conv_w.shape[0]
    num_classes = fc_w.shape[0]
    Hp, Wp = H + 2, W + 2
    Pp = N * Hp * Wp                 # padded, flattened spatial length (lanes)
    PAD = Wp + 1                     # max |tap shift|: keeps slices in bounds
    K_TAPS = 9 * C                   # 36
    K_PAD = ((K_TAPS + 1 + 7) // 8) * 8   # 40

    # --- tiny JAX-side glue: pad + transpose of the ~16 KiB input ---
    xpad = jnp.pad(x, ((0, 0), (0, 0), (1, 1), (1, 1)))            # (N,C,Hp,Wp)
    x_t = jnp.transpose(xpad, (1, 0, 2, 3)).reshape(C, Pp)         # (C, Pp)
    x_ext = jnp.pad(x_t, ((0, 0), (PAD, PAD)))                     # (C, 2PAD+Pp)

    # Conv weights tap-major (Cout, 9*C), conv bias folded in as column 9*C,
    # zero-padded to K_PAD so the kernel issues one sublane-aligned matmul.
    w_flat = jnp.transpose(conv_w, (0, 2, 3, 1)).reshape(Cout, K_TAPS)
    w_aug = jnp.concatenate(
        [w_flat, conv_b.reshape(Cout, 1),
         jnp.zeros((Cout, K_PAD - K_TAPS - 1), jnp.float32)], axis=1)

    # FC weights with bias folded in as the last column.
    fcw_aug = jnp.concatenate([fc_w, fc_b.reshape(num_classes, 1)], axis=1)

    # Constant pool selector: picks interior (non-halo) positions per sample,
    # with the 1/(H*W) mean scale folded in -> pooling is one matmul.
    pool_np = np.zeros((Pp, N), dtype=np.float32)
    for n in range(N):
        for h in range(H):
            base = n * Hp * Wp + (h + 1) * Wp + 1
            pool_np[base:base + W, n] = 1.0 / (H * W)
    pool_mat = jnp.asarray(pool_np)

    # Tap shifts in the padded/flattened index space (dh, dw in {-1,0,1}).
    shifts = tuple(dh * Wp + dw for dh in (-1, 0, 1) for dw in (-1, 0, 1))
    kernel = _make_fused_kernel(shifts, PAD, Pp, C)

    logits_t = pl.pallas_call(
        kernel,
        out_shape=jax.ShapeDtypeStruct((num_classes, N), jnp.float32),
        grid=(1,),
        in_specs=[
            pl.BlockSpec((C, PAD + Pp + PAD), lambda i: (0, 0)),
            pl.BlockSpec((Cout, K_PAD), lambda i: (0, 0)),
            pl.BlockSpec((Pp, N), lambda i: (0, 0)),
            pl.BlockSpec((num_classes, Cout + 1), lambda i: (0, 0)),
        ],
        out_specs=pl.BlockSpec((num_classes, N), lambda i: (0, 0)),
        scratch_shapes=[pltpu.VMEM((K_PAD, Pp), jnp.float32)],
        compiler_params=pltpu.CompilerParams(
            dimension_semantics=("arbitrary",)),
    )(x_ext, w_aug, pool_mat, fcw_aug)

    return logits_t.T                # (N, num_classes)


# ------------------------------ reference ----------------------------------

def reference_forward(x, params):
    conv_w, conv_b, fc_w, fc_b = params
    y = jax.lax.conv_general_dilated(
        x, conv_w, window_strides=(1, 1), padding=((1, 1), (1, 1)),
        dimension_numbers=("NCHW", "OIHW", "NCHW"))
    y = jnp.maximum(y + conv_b[None, :, None, None], 0.0)
    pooled = jnp.mean(y, axis=(2, 3))
    return pooled @ fc_w.T + fc_b


# --------------------------------- main -------------------------------------

if __name__ == "__main__":
    key = jax.random.PRNGKey(0)
    k_x, k_cw, k_cb, k_fw, k_fb = jax.random.split(key, 5)

    N, C, H, W = 2, 4, 16, 16
    Cout, num_classes = 8, 10

    x = jax.random.normal(k_x, (N, C, H, W), dtype=jnp.float32)
    conv_w = jax.random.normal(k_cw, (Cout, C, 3, 3), dtype=jnp.float32) * 0.1
    conv_b = jax.random.normal(k_cb, (Cout,), dtype=jnp.float32) * 0.1
    fc_w = jax.random.normal(k_fw, (num_classes, Cout), dtype=jnp.float32) * 0.1
    fc_b = jax.random.normal(k_fb, (num_classes,), dtype=jnp.float32) * 0.1
    params = (conv_w, conv_b, fc_w, fc_b)

    fwd = jax.jit(model_wrapper_forward)
    out = jax.block_until_ready(fwd(x, params))
    ref = jax.block_until_ready(reference_forward(x, params))

    assert out.shape == (N, num_classes)
    assert jnp.allclose(out, ref, atol=1e-4, rtol=1e-4), "mismatch vs reference"
    print("KERNEL_OK")
</pallas_src>

<mosaic_0001>
module attributes {stable_mosaic.version = 11 : i64} {
  func.func @kernel(%arg0: i32, %arg1: memref<4x686xf32, #tpu.memory_space<vmem>>, %arg2: memref<8x40xf32, #tpu.memory_space<vmem>>, %arg3: memref<648x2xf32, #tpu.memory_space<vmem>>, %arg4: memref<10x9xf32, #tpu.memory_space<vmem>>, %arg5: memref<10x2xf32, #tpu.memory_space<vmem>>, %arg6: memref<40x648xf32, #tpu.memory_space<vmem>>) attributes {dimension_semantics = [#tpu.dimension_semantics<arbitrary>], iteration_bounds = array<i64: 1>, scalar_prefetch = 0 : i64, scratch_operands = 1 : i64, tpu.core_type = #tpu.core_type<tc>, window_params = [{pipeline_mode = #tpu.pipeline_mode<synchronous>, transform_indices = @transform_0, window_bounds = array<i64: 4, 686>}, {pipeline_mode = #tpu.pipeline_mode<synchronous>, transform_indices = @transform_1, window_bounds = array<i64: 8, 40>}, {pipeline_mode = #tpu.pipeline_mode<synchronous>, transform_indices = @transform_2, window_bounds = array<i64: 648, 2>}, {pipeline_mode = #tpu.pipeline_mode<synchronous>, transform_indices = @transform_3, window_bounds = array<i64: 10, 9>}, {pipeline_mode = #tpu.pipeline_mode<synchronous>, transform_indices = @transform_4, window_bounds = array<i64: 10, 2>}]} {
    %c0 = arith.constant 0 : index
    %c0_0 = arith.constant 0 : index
    %0 = vector.load %arg1[%c0, %c0_0] : memref<4x686xf32, #tpu.memory_space<vmem>>, vector<4x648xf32>
    %c0_1 = arith.constant 0 : index
    %c0_2 = arith.constant 0 : index
    %1 = vector.load %arg6[%c0_1, %c0_2] : memref<40x648xf32, #tpu.memory_space<vmem>>, vector<4x648xf32>
    tpu.vector_store %arg6[%c0_1, %c0_2], %0 {strides = array<i32>} : memref<40x648xf32, #tpu.memory_space<vmem>>, vector<4x648xf32>,
    %c0_3 = arith.constant 0 : index
    %c1 = arith.constant 1 : index
    %2 = vector.load %arg1[%c0_3, %c1] : memref<4x686xf32, #tpu.memory_space<vmem>>, vector<4x648xf32>
    %c4 = arith.constant 4 : index
    %c0_4 = arith.constant 0 : index
    %3 = vector.load %arg6[%c4, %c0_4] : memref<40x648xf32, #tpu.memory_space<vmem>>, vector<4x648xf32>
    tpu.vector_store %arg6[%c4, %c0_4], %2 {strides = array<i32>} : memref<40x648xf32, #tpu.memory_space<vmem>>, vector<4x648xf32>,
    %c0_5 = arith.constant 0 : index
    %c2 = arith.constant 2 : index
    %4 = vector.load %arg1[%c0_5, %c2] : memref<4x686xf32, #tpu.memory_space<vmem>>, vector<4x648xf32>
    %c8 = arith.constant 8 : index
    %c0_6 = arith.constant 0 : index
    %5 = vector.load %arg6[%c8, %c0_6] : memref<40x648xf32, #tpu.memory_space<vmem>>, vector<4x648xf32>
    tpu.vector_store %arg6[%c8, %c0_6], %4 {strides = array<i32>} : memref<40x648xf32, #tpu.memory_space<vmem>>, vector<4x648xf32>,
    %c0_7 = arith.constant 0 : index
    %c18 = arith.constant 18 : index
    %6 = vector.load %arg1[%c0_7, %c18] : memref<4x686xf32, #tpu.memory_space<vmem>>, vector<4x648xf32>
    %c12 = arith.constant 12 : index
    %c0_8 = arith.constant 0 : index
    %7 = vector.load %arg6[%c12, %c0_8] : memref<40x648xf32, #tpu.memory_space<vmem>>, vector<4x648xf32>
    tpu.vector_store %arg6[%c12, %c0_8], %6 {strides = array<i32>} : memref<40x648xf32, #tpu.memory_space<vmem>>, vector<4x648xf32>,
    %c0_9 = arith.constant 0 : index
    %c19 = arith.constant 19 : index
    %8 = vector.load %arg1[%c0_9, %c19] : memref<4x686xf32, #tpu.memory_space<vmem>>, vector<4x648xf32>
    %c16 = arith.constant 16 : index
    %c0_10 = arith.constant 0 : index
    %9 = vector.load %arg6[%c16, %c0_10] : memref<40x648xf32, #tpu.memory_space<vmem>>, vector<4x648xf32>
    tpu.vector_store %arg6[%c16, %c0_10], %8 {strides = array<i32>} : memref<40x648xf32, #tpu.memory_space<vmem>>, vector<4x648xf32>,
    %c0_11 = arith.constant 0 : index
    %c20 = arith.constant 20 : index
    %10 = vector.load %arg1[%c0_11, %c20] : memref<4x686xf32, #tpu.memory_space<vmem>>, vector<4x648xf32>
    %c20_12 = arith.constant 20 : index
    %c0_13 = arith.constant 0 : index
    %11 = vector.load %arg6[%c20_12, %c0_13] : memref<40x648xf32, #tpu.memory_space<vmem>>, vector<4x648xf32>
    tpu.vector_store %arg6[%c20_12, %c0_13], %10 {strides = array<i32>} : memref<40x648xf32, #tpu.memory_space<vmem>>, vector<4x648xf32>,
    %c0_14 = arith.constant 0 : index
    %c36 = arith.constant 36 : index
    %12 = vector.load %arg1[%c0_14, %c36] : memref<4x686xf32, #tpu.memory_space<vmem>>, vector<4x648xf32>
    %c24 = arith.constant 24 : index
    %c0_15 = arith.constant 0 : index
    %13 = vector.load %arg6[%c24, %c0_15] : memref<40x648xf32, #tpu.memory_space<vmem>>, vector<4x648xf32>
    tpu.vector_store %arg6[%c24, %c0_15], %12 {strides = array<i32>} : memref<40x648xf32, #tpu.memory_space<vmem>>, vector<4x648xf32>,
    %c0_16 = arith.constant 0 : index
    %c37 = arith.constant 37 : index
    %14 = vector.load %arg1[%c0_16, %c37] : memref<4x686xf32, #tpu.memory_space<vmem>>, vector<4x648xf32>
    %c28 = arith.constant 28 : index
    %c0_17 = arith.constant 0 : index
    %15 = vector.load %arg6[%c28, %c0_17] : memref<40x648xf32, #tpu.memory_space<vmem>>, vector<4x648xf32>
    tpu.vector_store %arg6[%c28, %c0_17], %14 {strides = array<i32>} : memref<40x648xf32, #tpu.memory_space<vmem>>, vector<4x648xf32>,
    %c0_18 = arith.constant 0 : index
    %c38 = arith.constant 38 : index
    %16 = vector.load %arg1[%c0_18, %c38] : memref<4x686xf32, #tpu.memory_space<vmem>>, vector<4x648xf32>
    %c32 = arith.constant 32 : index
    %c0_19 = arith.constant 0 : index
    %17 = vector.load %arg6[%c32, %c0_19] : memref<40x648xf32, #tpu.memory_space<vmem>>, vector<4x648xf32>
    tpu.vector_store %arg6[%c32, %c0_19], %16 {strides = array<i32>} : memref<40x648xf32, #tpu.memory_space<vmem>>, vector<4x648xf32>,
    %cst = arith.constant 1.000000e+00 : f32
    %18 = vector.broadcast %cst : f32 to vector<1x648xf32>
    %c36_20 = arith.constant 36 : index
    %c0_21 = arith.constant 0 : index
    %19 = vector.load %arg6[%c36_20, %c0_21] : memref<40x648xf32, #tpu.memory_space<vmem>>, vector<1x648xf32>
    tpu.vector_store %arg6[%c36_20, %c0_21], %18 {strides = array<i32>} : memref<40x648xf32, #tpu.memory_space<vmem>>, vector<1x648xf32>,
    %cst_22 = arith.constant 0.000000e+00 : f32
    %20 = vector.broadcast %cst_22 : f32 to vector<3x648xf32>
    %c37_23 = arith.constant 37 : index
    %c0_24 = arith.constant 0 : index
    %21 = vector.load %arg6[%c37_23, %c0_24] : memref<40x648xf32, #tpu.memory_space<vmem>>, vector<3x648xf32>
    tpu.vector_store %arg6[%c37_23, %c0_24], %20 {strides = array<i32>} : memref<40x648xf32, #tpu.memory_space<vmem>>, vector<3x648xf32>,
    %c0_25 = arith.constant 0 : index
    %c0_26 = arith.constant 0 : index
    %22 = vector.load %arg2[%c0_25, %c0_26] : memref<8x40xf32, #tpu.memory_space<vmem>>, vector<8x40xf32>
    %c0_27 = arith.constant 0 : index
    %c0_28 = arith.constant 0 : index
    %23 = vector.load %arg6[%c0_27, %c0_28] : memref<40x648xf32, #tpu.memory_space<vmem>>, vector<40x648xf32>
    %cst_29 = arith.constant dense<0.000000e+00> : vector<8x648xf32>
    %24 = tpu.matmul %22, %23, %cst_29 {dimension_numbers = #tpu.dot_dimension_numbers<[1], [0], [0], [1], [0, 0, 1, 1], [], []>} : vector<8x40xf32>, vector<40x648xf32>, vector<8x648xf32> -> vector<8x648xf32>
    %cst_30 = arith.constant 0.000000e+00 : f32
    %25 = vector.broadcast %cst_30 : f32 to vector<8x648xf32>
    %26 = arith.maximumf %24, %25 : vector<8x648xf32>
    %c0_31 = arith.constant 0 : index
    %c0_32 = arith.constant 0 : index
    %27 = vector.load %arg3[%c0_31, %c0_32] : memref<648x2xf32, #tpu.memory_space<vmem>>, vector<648x2xf32>
    %cst_33 = arith.constant dense<0.000000e+00> : vector<8x2xf32>
    %28 = tpu.matmul %26, %27, %cst_33 {dimension_numbers = #tpu.dot_dimension_numbers<[1], [0], [0], [1], [0, 0, 1, 1], [], []>} : vector<8x648xf32>, vector<648x2xf32>, vector<8x2xf32> -> vector<8x2xf32>
    %c0_34 = arith.constant 0 : index
    %c0_35 = arith.constant 0 : index
    %29 = vector.load %arg4[%c0_34, %c0_35] : memref<10x9xf32, #tpu.memory_space<vmem>>, vector<10x8xf32>
    %cst_36 = arith.constant dense<0.000000e+00> : vector<10x2xf32>
    %30 = tpu.matmul %29, %28, %cst_36 {dimension_numbers = #tpu.dot_dimension_numbers<[1], [0], [0], [1], [0, 0, 1, 1], [], []>} : vector<10x8xf32>, vector<8x2xf32>, vector<10x2xf32> -> vector<10x2xf32>
    %c0_37 = arith.constant 0 : index
    %c8_38 = arith.constant 8 : index
    %31 = vector.load %arg4[%c0_37, %c8_38] : memref<10x9xf32, #tpu.memory_space<vmem>>, vector<10x1xf32>
    %32 = vector.broadcast %31 : vector<10x1xf32> to vector<10x2xf32>
    %33 = arith.addf %30, %32 : vector<10x2xf32>
    %c0_39 = arith.constant 0 : index
    %c0_40 = arith.constant 0 : index
    %34 = vector.load %arg5[%c0_39, %c0_40] : memref<10x2xf32, #tpu.memory_space<vmem>>, vector<10x2xf32>
    tpu.vector_store %arg5[%c0_39, %c0_40], %33 {strides = array<i32>} : memref<10x2xf32, #tpu.memory_space<vmem>>, vector<10x2xf32>,
    return
  }
  func.func @transform_0(%arg0: i32) -> (i32, i32) {
    %c0_i32 = arith.constant 0 : i32
    %c0_i32_0 = arith.constant 0 : i32
    %c0_i32_1 = arith.constant 0 : i32
    return %c0_i32, %c0_i32_0 : i32, i32
  }
  func.func @transform_1(%arg0: i32) -> (i32, i32) {
    %c0_i32 = arith.constant 0 : i32
    %c0_i32_0 = arith.constant 0 : i32
    %c0_i32_1 = arith.constant 0 : i32
    return %c0_i32, %c0_i32_0 : i32, i32
  }
  func.func @transform_2(%arg0: i32) -> (i32, i32) {
    %c0_i32 = arith.constant 0 : i32
    %c0_i32_0 = arith.constant 0 : i32
    %c0_i32_1 = arith.constant 0 : i32
    return %c0_i32, %c0_i32_0 : i32, i32
  }
  func.func @transform_3(%arg0: i32) -> (i32, i32) {
    %c0_i32 = arith.constant 0 : i32
    %c0_i32_0 = arith.constant 0 : i32
    %c0_i32_1 = arith.constant 0 : i32
    return %c0_i32, %c0_i32_0 : i32, i32
  }
  func.func @transform_4(%arg0: i32) -> (i32, i32) {
    %c0_i32 = arith.constant 0 : i32
    %c0_i32_0 = arith.constant 0 : i32
    %c0_i32_1 = arith.constant 0 : i32
    return %c0_i32, %c0_i32_0 : i32, i32
  }
}

</mosaic_0001>

<llo_original>
// kernel: model_wrapper_forward.1
$region0: #{model_wrapper_forward.1}
  #allocation0 [shape = 'u32[]', space=smem, size = 0x4, offset = 0x4, fixed_abs, tag = 'smem constant byte address 0x4 - core index']
  #allocation1 [shape = 'u32[144,128]{1,0:T(1,128)}', space=vmem, size = 0x12000, scoped, tag = 'internal scratch']
  #allocation2 [shape = 'f32[40,648]{1,0:T(8,128)}', space=vmem, size = 0x1e000, scoped, tag = 'scratch operand']
  %s0 = inlined_call_operand.vmem [shape: f32[4,686], index: 0, kind: input, shape index: {}]
  %s1 = inlined_call_operand.vmem [shape: f32[8,40], index: 1, kind: input, shape index: {}]
  %s2 = inlined_call_operand.vmem [shape: f32[648,2], index: 2, kind: input, shape index: {}]
  %s3 = inlined_call_operand.vmem [shape: f32[10,9], index: 3, kind: input, shape index: {}]
  %s4 = inlined_call_operand.vmem [shape: f32[10,2], index: 4, kind: output, shape index: {}]
  %s5 = sld [smem:[#allocation0]]
  $region26: #{model_wrapper_forward.1} parent=0
    _
  %s7 = ssub.s32 1, %s5
  %s8 = scalar_select 0, %s7, %s5
  // Predicated region
  $region2: #{model_wrapper_forward.1} parent=0 // pred_check
    _
  $region3: #{model_wrapper_forward.1} parent=0 // pred_check_branch
    %10 = sbr.rel (0) target = $region5
  $region4: #{model_wrapper_forward.1} parent=0 // pred_region
    _
  $region5: #{model_wrapper_forward.1} parent=0 // pred_fallthru
    _
  // Predicated region
  $region6: #{model_wrapper_forward.1} parent=0 // pred_check
    _
  $region7: #{model_wrapper_forward.1} parent=0 // pred_check_branch
    %12 = sbr.rel (0) target = $region9
  $region8: #{model_wrapper_forward.1} parent=0 // pred_region
    _
  $region9: #{model_wrapper_forward.1} parent=0 // pred_fallthru
    _
  // Predicated region
  $region10: #{model_wrapper_forward.1} parent=0 // pred_check
    _
  $region11: #{model_wrapper_forward.1} parent=0 // pred_check_branch
    %14 = sbr.rel (0) target = $region13
  $region12: #{model_wrapper_forward.1} parent=0 // pred_region
    _
  $region13: #{model_wrapper_forward.1} parent=0 // pred_fallthru
    _
  // Predicated region
  $region14: #{model_wrapper_forward.1} parent=0 // pred_check
    _
  $region15: #{model_wrapper_forward.1} parent=0 // pred_check_branch
    %16 = sbr.rel (0) target = $region17
  $region16: #{model_wrapper_forward.1} parent=0 // pred_region
    _
  $region17: #{model_wrapper_forward.1} parent=0 // pred_fallthru
    _
  %v17 = vld [vmem:[%s0] sm:$0xff]
  %v18 = vld [vmem:[%s0 + $0x8] sm:$0xff]
  %v19 = vld [vmem:[%s0 + $0x10] sm:$0xff]
  %v23 = vcombine.high %v17, %v17
  %v24 = vcombine.high %v18, %v18
  %v25 = vcombine.high %v19, %v19
  %29 = vst [vmem:[#allocation2] sm:$0xf] %v17
  %30 = vst [vmem:[#allocation2 + $0x8] sm:$0xf] %v23
  %31 = vst [vmem:[#allocation2 + $0x10] sm:$0xf] %v18
  %32 = vst [vmem:[#allocation2 + $0x18] sm:$0xf] %v24
  %33 = vst [vmem:[#allocation2 + $0x20] sm:$0xf] %v19
  %vm34 = vcmask 60416
  %35 = vst.msk [vmem:[#allocation2 + $0x28] sm:$0xf] %vm34, %v25
  %v36 = vld [vmem:[%s0] sm:$0xff]
  %v37 = vld [vmem:[%s0 + $0x8] sm:$0xff]
  %v38 = vld [vmem:[%s0 + $0x10] sm:$0xff]
  %v42 = vcombine.low %v36, %v36
  %v43 = vcombine.low %v37, %v37
  %v44 = vcombine.low %v38, %v38
  %45 = vrot.lane.b32.xlu0 %v42, 127
  %v46 = vpop.permute.xlu0 %45
  %47 = vrot.lane.b32.xlu0 %v36, 127
  %v48 = vpop.permute.xlu0 %47
  %49 = vrot.lane.b32.xlu0 %v43, 127
  %v50 = vpop.permute.xlu0 %49
  %51 = vrot.lane.b32.xlu0 %v37, 127
  %v52 = vpop.permute.xlu0 %51
  %53 = vrot.lane.b32.xlu0 %v44, 127
  %v54 = vpop.permute.xlu0 %53
  %55 = vrot.lane.b32.xlu0 %v38, 127
  %v56 = vpop.permute.xlu0 %55
  %vm57 = vcmask 1039360
  %v58 = vsel %vm57, %v46, %v48
  %v59 = vsel %vm57, %v48, %v50
  %v60 = vsel %vm57, %v50, %v52
  %v61 = vsel %vm57, %v52, %v54
  %v62 = vsel %vm57, %v54, %v56
  %69 = vst [vmem:[#allocation2] sm:$0xf0] %v58
  %70 = vst [vmem:[#allocation2 + $0x8] sm:$0xf0] %v59
  %71 = vst [vmem:[#allocation2 + $0x10] sm:$0xf0] %v60
  %72 = vst [vmem:[#allocation2 + $0x18] sm:$0xf0] %v61
  %73 = vst [vmem:[#allocation2 + $0x20] sm:$0xf0] %v62
  %vm74 = vcmask 64516
  %75 = vst.msk [vmem:[#allocation2 + $0x28] sm:$0xf0] %vm74, %v56
  %v76 = vld [vmem:[%s0] sm:$0xff]
  %v77 = vld [vmem:[%s0 + $0x8] sm:$0xff]
  %v78 = vld [vmem:[%s0 + $0x10] sm:$0xff]
  %v82 = vcombine.high %v76, %v76
  %v83 = vcombine.high %v77, %v77
  %v84 = vcombine.high %v78, %v78
  %85 = vrot.lane.b32.xlu0 %v76, 126
  %v86 = vpop.permute.xlu0 %85
  %87 = vrot.lane.b32.xlu0 %v82, 126
  %v88 = vpop.permute.xlu0 %87
  %89 = vrot.lane.b32.xlu0 %v77, 126
  %v90 = vpop.permute.xlu0 %89
  %91 = vrot.lane.b32.xlu0 %v83, 126
  %v92 = vpop.permute.xlu0 %91
  %93 = vrot.lane.b32.xlu0 %v78, 126
  %v94 = vpop.permute.xlu0 %93
  %95 = vrot.lane.b32.xlu0 %v84, 126
  %v96 = vpop.permute.xlu0 %95
  %vm97 = vcmask 1031168
  %v98 = vsel %vm97, %v86, %v88
  %v99 = vsel %vm97, %v88, %v90
  %v100 = vsel %vm97, %v90, %v92
  %v101 = vsel %vm97, %v92, %v94
  %v102 = vsel %vm97, %v94, %v96
  %109 = vst [vmem:[#allocation2 + $0x30] sm:$0xf] %v98
  %110 = vst [vmem:[#allocation2 + $0x38] sm:$0xf] %v99
  %111 = vst [vmem:[#allocation2 + $0x40] sm:$0xf] %v100
  %112 = vst [vmem:[#allocation2 + $0x48] sm:$0xf] %v101
  %113 = vst [vmem:[#allocation2 + $0x50] sm:$0xf] %v102
  %114 = vst.msk [vmem:[#allocation2 + $0x58] sm:$0xf] %vm34, %v96
  %v115 = vld [vmem:[%s0] sm:$0xff]
  %v116 = vld [vmem:[%s0 + $0x8] sm:$0xff]
  %v117 = vld [vmem:[%s0 + $0x10] sm:$0xff]
  %v121 = vcombine.low %v115, %v115
  %v122 = vcombine.low %v116, %v116
  %v123 = vcombine.low %v117, %v117
  %124 = vrot.lane.b32.xlu0 %v121, 110
  %v125 = vpop.permute.xlu0 %124
  %126 = vrot.lane.b32.xlu0 %v115, 110
  %v127 = vpop.permute.xlu0 %126
  %128 = vrot.lane.b32.xlu0 %v122, 110
  %v129 = vpop.permute.xlu0 %128
  %130 = vrot.lane.b32.xlu0 %v116, 110
  %v131 = vpop.permute.xlu0 %130
  %132 = vrot.lane.b32.xlu0 %v123, 110
  %v133 = vpop.permute.xlu0 %132
  %134 = vrot.lane.b32.xlu0 %v117, 110
  %v135 = vpop.permute.xlu0 %134
  %vm136 = vcmask 900096
  %v137 = vsel %vm136, %v125, %v127
  %v138 = vsel %vm136, %v127, %v129
  %v139 = vsel %vm136, %v129, %v131
  %v140 = vsel %vm136, %v131, %v133
  %v141 = vsel %vm136, %v133, %v135
  %148 = vst [vmem:[#allocation2 + $0x30] sm:$0xf0] %v137
  %149 = vst [vmem:[#allocation2 + $0x38] sm:$0xf0] %v138
  %150 = vst [vmem:[#allocation2 + $0x40] sm:$0xf0] %v139
  %151 = vst [vmem:[#allocation2 + $0x48] sm:$0xf0] %v140
  %152 = vst [vmem:[#allocation2 + $0x50] sm:$0xf0] %v141
  %153 = vst.msk [vmem:[#allocation2 + $0x58] sm:$0xf0] %vm74, %v135
  %v154 = vld [vmem:[%s0] sm:$0xff]
  %v155 = vld [vmem:[%s0 + $0x8] sm:$0xff]
  %v156 = vld [vmem:[%s0 + $0x10] sm:$0xff]
  %v160 = vcombine.high %v154, %v154
  %v161 = vcombine.high %v155, %v155
  %v162 = vcombine.high %v156, %v156
  %163 = vrot.lane.b32.xlu0 %v154, 109
  %v164 = vpop.permute.xlu0 %163
  %165 = vrot.lane.b32.xlu0 %v160, 109
  %v166 = vpop.permute.xlu0 %165
  %167 = vrot.lane.b32.xlu0 %v155, 109
  %v168 = vpop.permute.xlu0 %167
  %169 = vrot.lane.b32.xlu0 %v161, 109
  %v170 = vpop.permute.xlu0 %169
  %171 = vrot.lane.b32.xlu0 %v156, 109
  %v172 = vpop.permute.xlu0 %171
  %173 = vrot.lane.b32.xlu0 %v162, 109
  %v174 = vpop.permute.xlu0 %173
  %vm175 = vcmask 891904
  %v176 = vsel %vm175, %v164, %v166
  %v177 = vsel %vm175, %v166, %v168
  %v178 = vsel %vm175, %v168, %v170
  %v179 = vsel %vm175, %v170, %v172
  %v180 = vsel %vm175, %v172, %v174
  %187 = vst [vmem:[#allocation2 + $0x60] sm:$0xf] %v176
  %188 = vst [vmem:[#allocation2 + $0x68] sm:$0xf] %v177
  %189 = vst [vmem:[#allocation2 + $0x70] sm:$0xf] %v178
  %190 = vst [vmem:[#allocation2 + $0x78] sm:$0xf] %v179
  %191 = vst [vmem:[#allocation2 + $0x80] sm:$0xf] %v180
  %192 = vst.msk [vmem:[#allocation2 + $0x88] sm:$0xf] %vm34, %v174
  %v193 = vld [vmem:[%s0] sm:$0xff]
  %v194 = vld [vmem:[%s0 + $0x8] sm:$0xff]
  %v195 = vld [vmem:[%s0 + $0x10] sm:$0xff]
  %v199 = vcombine.low %v193, %v193
  %v200 = vcombine.low %v194, %v194
  %v201 = vcombine.low %v195, %v195
  %202 = vrot.lane.b32.xlu0 %v199, 108
  %v203 = vpop.permute.xlu0 %202
  %204 = vrot.lane.b32.xlu0 %v193, 108
  %v205 = vpop.permute.xlu0 %204
  %206 = vrot.lane.b32.xlu0 %v200, 108
  %v207 = vpop.permute.xlu0 %206
  %208 = vrot.lane.b32.xlu0 %v194, 108
  %v209 = vpop.permute.xlu0 %208
  %210 = vrot.lane.b32.xlu0 %v201, 108
  %v211 = vpop.permute.xlu0 %210
  %212 = vrot.lane.b32.xlu0 %v195, 108
  %v213 = vpop.permute.xlu0 %212
  %vm214 = vcmask 883712
  %v215 = vsel %vm214, %v203, %v205
  %v216 = vsel %vm214, %v205, %v207
  %v217 = vsel %vm214, %v207, %v209
  %v218 = vsel %vm214, %v209, %v211
  %v219 = vsel %vm214, %v211, %v213
  %226 = vst [vmem:[#allocation2 + $0x60] sm:$0xf0] %v215
  %227 = vst [vmem:[#allocation2 + $0x68] sm:$0xf0] %v216
  %228 = vst [vmem:[#allocation2 + $0x70] sm:$0xf0] %v217
  %229 = vst [vmem:[#allocation2 + $0x78] sm:$0xf0] %v218
  %230 = vst [vmem:[#allocation2 + $0x80] sm:$0xf0] %v219
  %231 = vst.msk [vmem:[#allocation2 + $0x88] sm:$0xf0] %vm74, %v213
  %v232 = vld [vmem:[%s0] sm:$0xff]
  %v233 = vld [vmem:[%s0 + $0x8] sm:$0xff]
  %v234 = vld [vmem:[%s0 + $0x10] sm:$0xff]
  %v238 = vcombine.high %v232, %v232
  %v239 = vcombine.high %v233, %v233
  %v240 = vcombine.high %v234, %v234
  %241 = vrot.lane.b32.xlu0 %v232, 92
  %v242 = vpop.permute.xlu0 %241
  %243 = vrot.lane.b32.xlu0 %v238, 92
  %v244 = vpop.permute.xlu0 %243
  %245 = vrot.lane.b32.xlu0 %v233, 92
  %v246 = vpop.permute.xlu0 %245
  %247 = vrot.lane.b32.xlu0 %v239, 92
  %v248 = vpop.permute.xlu0 %247
  %249 = vrot.lane.b32.xlu0 %v234, 92
  %v250 = vpop.permute.xlu0 %249
  %251 = vrot.lane.b32.xlu0 %v240, 92
  %v252 = vpop.permute.xlu0 %251
  %vm253 = vcmask 752640
  %v254 = vsel %vm253, %v242, %v244
  %v255 = vsel %vm253, %v244, %v246
  %v256 = vsel %vm253, %v246, %v248
  %v257 = vsel %vm253, %v248, %v250
  %v258 = vsel %vm253, %v250, %v252
  %265 = vst [vmem:[#allocation2 + $0x90] sm:$0xf] %v254
  %266 = vst [vmem:[#allocation2 + $0x98] sm:$0xf] %v255
  %267 = vst [vmem:[#allocation2 + $0xa0] sm:$0xf] %v256
  %268 = vst [vmem:[#allocation2 + $0xa8] sm:$0xf] %v257
  %269 = vst [vmem:[#allocation2 + $0xb0] sm:$0xf] %v258
  %270 = vst.msk [vmem:[#allocation2 + $0xb8] sm:$0xf] %vm34, %v252
  %v271 = vld [vmem:[%s0] sm:$0xff]
  %v272 = vld [vmem:[%s0 + $0x8] sm:$0xff]
  %v273 = vld [vmem:[%s0 + $0x10] sm:$0xff]
  %v277 = vcombine.low %v271, %v271
  %v278 = vcombine.low %v272, %v272
  %v279 = vcombine.low %v273, %v273
  %280 = vrot.lane.b32.xlu0 %v277, 91
  %v281 = vpop.permute.xlu0 %280
  %282 = vrot.lane.b32.xlu0 %v271, 91
  %v283 = vpop.permute.xlu0 %282
  %284 = vrot.lane.b32.xlu0 %v278, 91
  %v285 = vpop.permute.xlu0 %284
  %286 = vrot.lane.b32.xlu0 %v272, 91
  %v287 = vpop.permute.xlu0 %286
  %288 = vrot.lane.b32.xlu0 %v279, 91
  %v289 = vpop.permute.xlu0 %288
  %290 = vrot.lane.b32.xlu0 %v273, 91
  %v291 = vpop.permute.xlu0 %290
  %vm292 = vcmask 744448
  %v293 = vsel %vm292, %v281, %v283
  %v294 = vsel %vm292, %v283, %v285
  %v295 = vsel %vm292, %v285, %v287
  %v296 = vsel %vm292, %v287, %v289
  %v297 = vsel %vm292, %v289, %v291
  %304 = vst [vmem:[#allocation2 + $0x90] sm:$0xf0] %v293
  %305 = vst [vmem:[#allocation2 + $0x98] sm:$0xf0] %v294
  %306 = vst [vmem:[#allocation2 + $0xa0] sm:$0xf0] %v295
  %307 = vst [vmem:[#allocation2 + $0xa8] sm:$0xf0] %v296
  %308 = vst [vmem:[#allocation2 + $0xb0] sm:$0xf0] %v297
  %309 = vst.msk [vmem:[#allocation2 + $0xb8] sm:$0xf0] %vm74, %v291
  %v310 = vld [vmem:[%s0] sm:$0xff]
  %v311 = vld [vmem:[%s0 + $0x8] sm:$0xff]
  %v312 = vld [vmem:[%s0 + $0x10] sm:$0xff]
  %v316 = vcombine.high %v310, %v310
  %v317 = vcombine.high %v311, %v311
  %v318 = vcombine.high %v312, %v312
  %319 = vrot.lane.b32.xlu0 %v310, 90
  %v320 = vpop.permute.xlu0 %319
  %321 = vrot.lane.b32.xlu0 %v316, 90
  %v322 = vpop.permute.xlu0 %321
  %323 = vrot.lane.b32.xlu0 %v311, 90
  %v324 = vpop.permute.xlu0 %323
  %325 = vrot.lane.b32.xlu0 %v317, 90
  %v326 = vpop.permute.xlu0 %325
  %327 = vrot.lane.b32.xlu0 %v312, 90
  %v328 = vpop.permute.xlu0 %327
  %329 = vrot.lane.b32.xlu0 %v318, 90
  %v330 = vpop.permute.xlu0 %329
  %vm331 = vcmask 736256
  %v332 = vsel %vm331, %v320, %v322
  %v333 = vsel %vm331, %v322, %v324
  %v334 = vsel %vm331, %v324, %v326
  %v335 = vsel %vm331, %v326, %v328
  %v336 = vsel %vm331, %v328, %v330
  %343 = vst [vmem:[#allocation2 + $0xc0] sm:$0xf] %v332
  %344 = vst [vmem:[#allocation2 + $0xc8] sm:$0xf] %v333
  %345 = vst [vmem:[#allocation2 + $0xd0] sm:$0xf] %v334
  %346 = vst [vmem:[#allocation2 + $0xd8] sm:$0xf] %v335
  %347 = vst [vmem:[#allocation2 + $0xe0] sm:$0xf] %v336
  %348 = vst.msk [vmem:[#allocation2 + $0xe8] sm:$0xf] %vm34, %v330
  %v349 = vlaneseq
  %vm350 = vcmp.ge.s32.totalorder %v349, 0
  %vm351 = vcmp.lt.s32.totalorder %v349, 648
  %vm352 = vmand %vm350, %vm351
  %s353 = scalar_lea.vmem [#allocation2], 196
  %354 = vst.msk [vmem:[%s353] ss:$8 sm:$0xf] %vm352, 1.0
  %355 = vst.msk [vmem:[%s353] ss:$8 sm:$0x30] %vm352, 1.0
  %356 = vst [vmem:[#allocation2 + $0xc0] sm:$0xe0] 0.0
  %357 = vst [vmem:[#allocation2 + $0xc8] sm:$0xe0] 0.0
  %358 = vst [vmem:[#allocation2 + $0xd0] sm:$0xe0] 0.0
  %359 = vst [vmem:[#allocation2 + $0xd8] sm:$0xe0] 0.0
  %360 = vst [vmem:[#allocation2 + $0xe0] sm:$0xe0] 0.0
  %vm361 = vcmask 64517
  %362 = vst.msk [vmem:[#allocation2 + $0xe8] sm:$0xe0] %vm361, 0.0
  %v363 = vld [vmem:[%s1] sm:$0xff]
  %v364 = vld [vmem:[#allocation2] sm:$0xff]
  %v365 = vld [vmem:[#allocation2 + $0x8] sm:$0xff]
  %v366 = vld [vmem:[#allocation2 + $0x10] sm:$0xff]
  %v367 = vld [vmem:[#allocation2 + $0x18] sm:$0xff]
  %v368 = vld [vmem:[#allocation2 + $0x20] sm:$0xff]
  %v369 = vld [vmem:[#allocation2 + $0x28] sm:$0xff]
  %v370 = vld [vmem:[#allocation2 + $0x30] sm:$0xff]
  %v371 = vld [vmem:[#allocation2 + $0x38] sm:$0xff]
  %v372 = vld [vmem:[#allocation2 + $0x40] sm:$0xff]
  %v373 = vld [vmem:[#allocation2 + $0x48] sm:$0xff]
  %v374 = vld [vmem:[#allocation2 + $0x50] sm:$0xff]
  %v375 = vld [vmem:[#allocation2 + $0x58] sm:$0xff]
  %v376 = vld [vmem:[#allocation2 + $0x60] sm:$0xff]
  %v377 = vld [vmem:[#allocation2 + $0x68] sm:$0xff]
  %v378 = vld [vmem:[#allocation2 + $0x70] sm:$0xff]
  %v379 = vld [vmem:[#allocation2 + $0x78] sm:$0xff]
  %v380 = vld [vmem:[#allocation2 + $0x80] sm:$0xff]
  %v381 = vld [vmem:[#allocation2 + $0x88] sm:$0xff]
  %v382 = vld [vmem:[#allocation2 + $0x90] sm:$0xff]
  %v383 = vld [vmem:[#allocation2 + $0x98] sm:$0xff]
  %v384 = vld [vmem:[#allocation2 + $0xa0] sm:$0xff]
  %v385 = vld [vmem:[#allocation2 + $0xa8] sm:$0xff]
  %v386 = vld [vmem:[#allocation2 + $0xb0] sm:$0xff]
  %v387 = vld [vmem:[#allocation2 + $0xb8] sm:$0xff]
  %v388 = vld [vmem:[#allocation2 + $0xc0] sm:$0xff]
  %v389 = vld [vmem:[#allocation2 + $0xc8] sm:$0xff]
  %v390 = vld [vmem:[#allocation2 + $0xd0] sm:$0xff]
  %v391 = vld [vmem:[#allocation2 + $0xd8] sm:$0xff]
  %v392 = vld [vmem:[#allocation2 + $0xe0] sm:$0xff]
  %v393 = vld [vmem:[#allocation2 + $0xe8] sm:$0xff]
  %vm394 = vcmask 326656
  %v396 = vsel %vm394, %v363, 0
  %398 = vmatprep.subr.mxu0 %v365
  %399 = vmatpush1.msra.mxu0 %v364
  %400 = vmatprep.subr.mxu0 %v371
  %401 = vmatpush1.msra.mxu0 %v370
  %402 = vmatprep.subr.mxu0 %v377
  %403 = vmatpush1.msra.mxu0 %v376
  %404 = vmatprep.subr.mxu0 %v383
  %405 = vmatpush1.msra.mxu0 %v382
  %406 = vmatprep.subr.mxu0 %v389
  %407 = vmatpush1.msra.mxu0 %v388
  %408 = vmatprep.subr.mxu0 0.0
  %409 = vmatpush1.msra.mxu0 0.0
  %410 = vmatprep.subr.mxu0 0.0
  %411 = vmatpush1.msra.mxu0 0.0
  %412 = vmatprep.subr.mxu0 0.0
  %413 = vmatpush1.msra.mxu0 0.0
  %414 = vmatprep.subr.mxu0 0.0
  %415 = vmatpush1.msra.mxu0 0.0
  %416 = vmatprep.subr.mxu0 0.0
  %417 = vmatpush1.msra.mxu0 0.0
  %418 = vmatprep.subr.mxu0 0.0
  %419 = vmatpush1.msra.mxu0 0.0
  %420 = vmatprep.subr.mxu0 0.0
  %421 = vmatpush1.msra.mxu0 0.0
  %422 = vmatprep.subr.mxu0 0.0
  %423 = vmatpush1.msra.mxu0 0.0
  %424 = vmatprep.subr.mxu0 0.0
  %425 = vmatpush1.msra.mxu0 0.0
  %426 = vmatprep.subr.mxu0 0.0
  %427 = vmatpush1.msra.mxu0 0.0
  %428 = vmatprep.subr.mxu0 0.0
  %429 = vmatpush1.msra.mxu0 0.0
  %430 = vmatprep.subr.mxu0 0.0
  %431 = vmatpush1.msra.mxu0 0.0
  %432 = vmatprep.subr.mxu0 0.0
  %433 = vmatpush1.msra.mxu0 0.0
  %434 = vmatprep.subr.mxu0 0.0
  %435 = vmatpush1.msra.mxu0 0.0
  %436 = vmatprep.subr.mxu0 0.0
  %437 = vmatpush1.msra.mxu0 0.0
  %438 = vmatprep.subr.mxu0 0.0
  %439 = vmatpush1.msra.mxu0 0.0
  %440 = vmatprep.subr.mxu0 0.0
  %441 = vmatpush1.msra.mxu0 0.0
  %442 = vmatprep.subr.mxu0 0.0
  %443 = vmatpush1.msra.mxu0 0.0
  %444 = vmatprep.subr.mxu0 0.0
  %445 = vmatpush1.msra.mxu0 0.0
  %446 = vmatprep.subr.mxu0 0.0
  %447 = vmatpush1.msra.mxu0 0.0
  %448 = vmatprep.subr.mxu0 0.0
  %449 = vmatpush1.msra.mxu0 0.0
  %450 = vmatprep.subr.mxu0 0.0
  %451 = vmatpush1.msra.mxu0 0.0
  %452 = vmatprep.subr.mxu0 0.0
  %453 = vmatpush1.msra.mxu0 0.0
  %454 = vmatprep.subr.mxu0 0.0
  %455 = vmatpush1.msra.mxu0 0.0
  %456 = vmatprep.subr.mxu0 0.0
  %457 = vmatpush1.msra.mxu0 0.0
  %458 = vmatprep.subr.mxu0 0.0
  %459 = vmatpush1.msra.mxu0 0.0
  %460 = vmatprep.subr.mxu0 0.0
  %461 = vmatpush1.msra.mxu0 0.0
  %462 = vmatprep.mubr.f32.mxu0 0.0
  %463 = vmatmul.mubr.f32.gmra.mrb[0].mxu0 %v396
  %v464 = vpop.f32.mrb[0].mxu0
  %v465 = vadd.f32 0.0, %v464
  %v466 = vpop.f32.mrb[0].mxu0
  %v467 = vadd.f32 0.0, %v466
  %468 = vdwg.mxu0
  %469 = vmatprep.subr.mxu0 %v367
  %470 = vmatpush1.msra.mxu0 %v366
  %471 = vmatprep.subr.mxu0 %v373
  %472 = vmatpush1.msra.mxu0 %v372
  %473 = vmatprep.subr.mxu0 %v379
  %474 = vmatpush1.msra.mxu0 %v378
  %475 = vmatprep.subr.mxu0 %v385
  %476 = vmatpush1.msra.mxu0 %v384
  %477 = vmatprep.subr.mxu0 %v391
  %478 = vmatpush1.msra.mxu0 %v390
  %479 = vmatprep.subr.mxu0 0.0
  %480 = vmatpush1.msra.mxu0 0.0
  %481 = vmatprep.subr.mxu0 0.0
  %482 = vmatpush1.msra.mxu0 0.0
  %483 = vmatprep.subr.mxu0 0.0
  %484 = vmatpush1.msra.mxu0 0.0
  %485 = vmatprep.subr.mxu0 0.0
  %486 = vmatpush1.msra.mxu0 0.0
  %487 = vmatprep.subr.mxu0 0.0
  %488 = vmatpush1.msra.mxu0 0.0
  %489 = vmatprep.subr.mxu0 0.0
  %490 = vmatpush1.msra.mxu0 0.0
  %491 = vmatprep.subr.mxu0 0.0
  %492 = vmatpush1.msra.mxu0 0.0
  %493 = vmatprep.subr.mxu0 0.0
  %494 = vmatpush1.msra.mxu0 0.0
  %495 = vmatprep.subr.mxu0 0.0
  %496 = vmatpush1.msra.mxu0 0.0
  %497 = vmatprep.subr.mxu0 0.0
  %498 = vmatpush1.msra.mxu0 0.0
  %499 = vmatprep.subr.mxu0 0.0
  %500 = vmatpush1.msra.mxu0 0.0
  %501 = vmatprep.subr.mxu0 0.0
  %502 = vmatpush1.msra.mxu0 0.0
  %503 = vmatprep.subr.mxu0 0.0
  %504 = vmatpush1.msra.mxu0 0.0
  %505 = vmatprep.subr.mxu0 0.0
  %506 = vmatpush1.msra.mxu0 0.0
  %507 = vmatprep.subr.mxu0 0.0
  %508 = vmatpush1.msra.mxu0 0.0
  %509 = vmatprep.subr.mxu0 0.0
  %510 = vmatpush1.msra.mxu0 0.0
  %511 = vmatprep.subr.mxu0 0.0
  %512 = vmatpush1.msra.mxu0 0.0
  %513 = vmatprep.subr.mxu0 0.0
  %514 = vmatpush1.msra.mxu0 0.0
  %515 = vmatprep.subr.mxu0 0.0
  %516 = vmatpush1.msra.mxu0 0.0
  %517 = vmatprep.subr.mxu0 0.0
  %518 = vmatpush1.msra.mxu0 0.0
  %519 = vmatprep.subr.mxu0 0.0
  %520 = vmatpush1.msra.mxu0 0.0
  %521 = vmatprep.subr.mxu0 0.0
  %522 = vmatpush1.msra.mxu0 0.0
  %523 = vmatprep.subr.mxu0 0.0
  %524 = vmatpush1.msra.mxu0 0.0
  %525 = vmatprep.subr.mxu0 0.0
  %526 = vmatpush1.msra.mxu0 0.0
  %527 = vmatprep.subr.mxu0 0.0
  %528 = vmatpush1.msra.mxu0 0.0
  %529 = vmatprep.subr.mxu0 0.0
  %530 = vmatpush1.msra.mxu0 0.0
  %531 = vmatprep.subr.mxu0 0.0
  %532 = vmatpush1.msra.mxu0 0.0
  %533 = vmatprep.mubr.f32.mxu0 0.0
  %534 = vmatmul.mubr.f32.gmra.mrb[0].mxu0 %v396
  %v535 = vpop.f32.mrb[0].mxu0
  %v536 = vadd.f32 0.0, %v535
  %v537 = vpop.f32.mrb[0].mxu0
  %v538 = vadd.f32 0.0, %v537
  %539 = vdwg.mxu0
  %540 = vmatprep.subr.mxu0 %v369
  %541 = vmatpush1.msra.mxu0 %v368
  %542 = vmatprep.subr.mxu0 %v375
  %543 = vmatpush1.msra.mxu0 %v374
  %544 = vmatprep.subr.mxu0 %v381
  %545 = vmatpush1.msra.mxu0 %v380
  %546 = vmatprep.subr.mxu0 %v387
  %547 = vmatpush1.msra.mxu0 %v386
  %548 = vmatprep.subr.mxu0 %v393
  %549 = vmatpush1.msra.mxu0 %v392
  %550 = vmatprep.subr.mxu0 0.0
  %551 = vmatpush1.msra.mxu0 0.0
  %552 = vmatprep.subr.mxu0 0.0
  %553 = vmatpush1.msra.mxu0 0.0
  %554 = vmatprep.subr.mxu0 0.0
  %555 = vmatpush1.msra.mxu0 0.0
  %556 = vmatprep.subr.mxu0 0.0
  %557 = vmatpush1.msra.mxu0 0.0
  %558 = vmatprep.subr.mxu0 0.0
  %559 = vmatpush1.msra.mxu0 0.0
  %560 = vmatprep.subr.mxu0 0.0
  %561 = vmatpush1.msra.mxu0 0.0
  %562 = vmatprep.subr.mxu0 0.0
  %563 = vmatpush1.msra.mxu0 0.0
  %564 = vmatprep.subr.mxu0 0.0
  %565 = vmatpush1.msra.mxu0 0.0
  %566 = vmatprep.subr.mxu0 0.0
  %567 = vmatpush1.msra.mxu0 0.0
  %568 = vmatprep.subr.mxu0 0.0
  %569 = vmatpush1.msra.mxu0 0.0
  %570 = vmatprep.subr.mxu0 0.0
  %571 = vmatpush1.msra.mxu0 0.0
  %572 = vmatprep.subr.mxu0 0.0
  %573 = vmatpush1.msra.mxu0 0.0
  %574 = vmatprep.subr.mxu0 0.0
  %575 = vmatpush1.msra.mxu0 0.0
  %576 = vmatprep.subr.mxu0 0.0
  %577 = vmatpush1.msra.mxu0 0.0
  %578 = vmatprep.subr.mxu0 0.0
  %579 = vmatpush1.msra.mxu0 0.0
  %580 = vmatprep.subr.mxu0 0.0
  %581 = vmatpush1.msra.mxu0 0.0
  %582 = vmatprep.subr.mxu0 0.0
  %583 = vmatpush1.msra.mxu0 0.0
  %584 = vmatprep.subr.mxu0 0.0
  %585 = vmatpush1.msra.mxu0 0.0
  %586 = vmatprep.subr.mxu0 0.0
  %587 = vmatpush1.msra.mxu0 0.0
  %588 = vmatprep.subr.mxu0 0.0
  %589 = vmatpush1.msra.mxu0 0.0
  %590 = vmatprep.subr.mxu0 0.0
  %591 = vmatpush1.msra.mxu0 0.0
  %592 = vmatprep.subr.mxu0 0.0
  %593 = vmatpush1.msra.mxu0 0.0
  %594 = vmatprep.subr.mxu0 0.0
  %595 = vmatpush1.msra.mxu0 0.0
  %596 = vmatprep.subr.mxu0 0.0
  %597 = vmatpush1.msra.mxu0 0.0
  %598 = vmatprep.subr.mxu0 0.0
  %599 = vmatpush1.msra.mxu0 0.0
  %600 = vmatprep.subr.mxu0 0.0
  %601 = vmatpush1.msra.mxu0 0.0
  %602 = vmatprep.subr.mxu0 0.0
  %603 = vmatpush1.msra.mxu0 0.0
  %604 = vmatprep.mubr.f32.mxu0 0.0
  %605 = vmatmul.mubr.f32.gmra.mrb[0].mxu0 %v396
  %v606 = vpop.f32.mrb[0].mxu0
  %v607 = vadd.f32 0.0, %v606
  %v608 = vpop.f32.mrb[0].mxu0
  %v609 = vadd.f32 0.0, %v608
  %610 = vdwg.mxu0
  %v611 = vmax.f32 %v465, 0.0
  %v612 = vmax.f32 %v467, 0.0
  %v613 = vmax.f32 %v536, 0.0
  %v614 = vmax.f32 %v538, 0.0
  %v615 = vmax.f32 %v607, 0.0
  %v616 = vmax.f32 %v609, 0.0
  %v617 = vld [vmem:[%s2] sm:$0xff]
  %v618 = vld [vmem:[%s2 + $0x8] sm:$0xff]
  %v619 = vld [vmem:[%s2 + $0x10] sm:$0xff]
  %v620 = vld [vmem:[%s2 + $0x18] sm:$0xff]
  %v621 = vld [vmem:[%s2 + $0x20] sm:$0xff]
  %v622 = vld [vmem:[%s2 + $0x28] sm:$0xff]
  %v623 = vld [vmem:[%s2 + $0x30] sm:$0xff]
  %v624 = vld [vmem:[%s2 + $0x38] sm:$0xff]
  %v625 = vld [vmem:[%s2 + $0x40] sm:$0xff]
  %v626 = vld [vmem:[%s2 + $0x48] sm:$0xff]
  %v627 = vld [vmem:[%s2 + $0x50] sm:$0xff]
  %v628 = vld [vmem:[%s2 + $0x58] sm:$0xff]
  %v629 = vld [vmem:[%s2 + $0x60] sm:$0xff]
  %v630 = vld [vmem:[%s2 + $0x68] sm:$0xff]
  %v631 = vld [vmem:[%s2 + $0x70] sm:$0xff]
  %v632 = vld [vmem:[%s2 + $0x78] sm:$0xff]
  %v633 = vld [vmem:[%s2 + $0x80] sm:$0xff]
  %v634 = vld [vmem:[%s2 + $0x88] sm:$0xff]
  %v635 = vld [vmem:[%s2 + $0x90] sm:$0xff]
  %v636 = vld [vmem:[%s2 + $0x98] sm:$0xff]
  %v637 = vld [vmem:[%s2 + $0xa0] sm:$0xff]
  %v638 = vld [vmem:[%s2 + $0xa8] sm:$0xff]
  %v639 = vld [vmem:[%s2 + $0xb0] sm:$0xff]
  %v640 = vld [vmem:[%s2 + $0xb8] sm:$0xff]
  %v641 = vld [vmem:[%s2 + $0xc0] sm:$0xff]
  %v642 = vld [vmem:[%s2 + $0xc8] sm:$0xff]
  %v643 = vld [vmem:[%s2 + $0xd0] sm:$0xff]
  %v644 = vld [vmem:[%s2 + $0xd8] sm:$0xff]
  %v645 = vld [vmem:[%s2 + $0xe0] sm:$0xff]
  %v646 = vld [vmem:[%s2 + $0xe8] sm:$0xff]
  %v647 = vld [vmem:[%s2 + $0xf0] sm:$0xff]
  %v648 = vld [vmem:[%s2 + $0xf8] sm:$0xff]
  %v649 = vld [vmem:[%s2 + $0x100] sm:$0xff]
  %v650 = vld [vmem:[%s2 + $0x108] sm:$0xff]
  %v651 = vld [vmem:[%s2 + $0x110] sm:$0xff]
  %v652 = vld [vmem:[%s2 + $0x118] sm:$0xff]
  %v653 = vld [vmem:[%s2 + $0x120] sm:$0xff]
  %v654 = vld [vmem:[%s2 + $0x128] sm:$0xff]
  %v655 = vld [vmem:[%s2 + $0x130] sm:$0xff]
  %v656 = vld [vmem:[%s2 + $0x138] sm:$0xff]
  %v657 = vld [vmem:[%s2 + $0x140] sm:$0xff]
  %v658 = vld [vmem:[%s2 + $0x148] sm:$0xff]
  %v659 = vld [vmem:[%s2 + $0x150] sm:$0xff]
  %v660 = vld [vmem:[%s2 + $0x158] sm:$0xff]
  %v661 = vld [vmem:[%s2 + $0x160] sm:$0xff]
  %v662 = vld [vmem:[%s2 + $0x168] sm:$0xff]
  %v663 = vld [vmem:[%s2 + $0x170] sm:$0xff]
  %v664 = vld [vmem:[%s2 + $0x178] sm:$0xff]
  %v665 = vld [vmem:[%s2 + $0x180] sm:$0xff]
  %v666 = vld [vmem:[%s2 + $0x188] sm:$0xff]
  %v667 = vld [vmem:[%s2 + $0x190] sm:$0xff]
  %v668 = vld [vmem:[%s2 + $0x198] sm:$0xff]
  %v669 = vld [vmem:[%s2 + $0x1a0] sm:$0xff]
  %v670 = vld [vmem:[%s2 + $0x1a8] sm:$0xff]
  %v671 = vld [vmem:[%s2 + $0x1b0] sm:$0xff]
  %v672 = vld [vmem:[%s2 + $0x1b8] sm:$0xff]
  %v673 = vld [vmem:[%s2 + $0x1c0] sm:$0xff]
  %v674 = vld [vmem:[%s2 + $0x1c8] sm:$0xff]
  %v675 = vld [vmem:[%s2 + $0x1d0] sm:$0xff]
  %v676 = vld [vmem:[%s2 + $0x1d8] sm:$0xff]
  %v677 = vld [vmem:[%s2 + $0x1e0] sm:$0xff]
  %v678 = vld [vmem:[%s2 + $0x1e8] sm:$0xff]
  %v679 = vld [vmem:[%s2 + $0x1f0] sm:$0xff]
  %v680 = vld [vmem:[%s2 + $0x1f8] sm:$0xff]
  %v681 = vld [vmem:[%s2 + $0x200] sm:$0xff]
  %v682 = vld [vmem:[%s2 + $0x208] sm:$0xff]
  %v683 = vld [vmem:[%s2 + $0x210] sm:$0xff]
  %v684 = vld [vmem:[%s2 + $0x218] sm:$0xff]
  %v685 = vld [vmem:[%s2 + $0x220] sm:$0xff]
  %v686 = vld [vmem:[%s2 + $0x228] sm:$0xff]
  %v687 = vld [vmem:[%s2 + $0x230] sm:$0xff]
  %v688 = vld [vmem:[%s2 + $0x238] sm:$0xff]
  %v689 = vld [vmem:[%s2 + $0x240] sm:$0xff]
  %v690 = vld [vmem:[%s2 + $0x248] sm:$0xff]
  %v691 = vld [vmem:[%s2 + $0x250] sm:$0xff]
  %v692 = vld [vmem:[%s2 + $0x258] sm:$0xff]
  %v693 = vld [vmem:[%s2 + $0x260] sm:$0xff]
  %v694 = vld [vmem:[%s2 + $0x268] sm:$0xff]
  %v695 = vld [vmem:[%s2 + $0x270] sm:$0xff]
  %v696 = vld [vmem:[%s2 + $0x278] sm:$0xff]
  %v697 = vld [vmem:[%s2 + $0x280] sm:$0xff]
  %vm698 = vcmask 64512
  %v700 = vsel %vm698, %v616, 0
  %702 = vmatprep.subr.mxu0 0.0
  %703 = vmatpush1.msra.mxu0 %v617
  %704 = vmatprep.subr.mxu0 0.0
  %705 = vmatpush1.msra.mxu0 %v618
  %706 = vmatprep.subr.mxu0 0.0
  %707 = vmatpush1.msra.mxu0 %v619
  %708 = vmatprep.subr.mxu0 0.0
  %709 = vmatpush1.msra.mxu0 %v620
  %710 = vmatprep.subr.mxu0 0.0
  %711 = vmatpush1.msra.mxu0 %v621
  %712 = vmatprep.subr.mxu0 0.0
  %713 = vmatpush1.msra.mxu0 %v622
  %714 = vmatprep.subr.mxu0 0.0
  %715 = vmatpush1.msra.mxu0 %v623
  %716 = vmatprep.subr.mxu0 0.0
  %717 = vmatpush1.msra.mxu0 %v624
  %718 = vmatprep.subr.mxu0 0.0
  %719 = vmatpush1.msra.mxu0 %v625
  %720 = vmatprep.subr.mxu0 0.0
  %721 = vmatpush1.msra.mxu0 %v626
  %722 = vmatprep.subr.mxu0 0.0
  %723 = vmatpush1.msra.mxu0 %v627
  %724 = vmatprep.subr.mxu0 0.0
  %725 = vmatpush1.msra.mxu0 %v628
  %726 = vmatprep.subr.mxu0 0.0
  %727 = vmatpush1.msra.mxu0 %v629
  %728 = vmatprep.subr.mxu0 0.0
  %729 = vmatpush1.msra.mxu0 %v630
  %730 = vmatprep.subr.mxu0 0.0
  %731 = vmatpush1.msra.mxu0 %v631
  %732 = vmatprep.subr.mxu0 0.0
  %733 = vmatpush1.msra.mxu0 %v632
  %734 = vmatprep.subr.mxu0 0.0
  %735 = vmatpush1.msra.mxu0 %v633
  %736 = vmatprep.subr.mxu0 0.0
  %737 = vmatpush1.msra.mxu0 %v634
  %738 = vmatprep.subr.mxu0 0.0
  %739 = vmatpush1.msra.mxu0 %v635
  %740 = vmatprep.subr.mxu0 0.0
  %741 = vmatpush1.msra.mxu0 %v636
  %742 = vmatprep.subr.mxu0 0.0
  %743 = vmatpush1.msra.mxu0 %v637
  %744 = vmatprep.subr.mxu0 0.0
  %745 = vmatpush1.msra.mxu0 %v638
  %746 = vmatprep.subr.mxu0 0.0
  %747 = vmatpush1.msra.mxu0 %v639
  %748 = vmatprep.subr.mxu0 0.0
  %749 = vmatpush1.msra.mxu0 %v640
  %750 = vmatprep.subr.mxu0 0.0
  %751 = vmatpush1.msra.mxu0 %v641
  %752 = vmatprep.subr.mxu0 0.0
  %753 = vmatpush1.msra.mxu0 %v642
  %754 = vmatprep.subr.mxu0 0.0
  %755 = vmatpush1.msra.mxu0 %v643
  %756 = vmatprep.subr.mxu0 0.0
  %757 = vmatpush1.msra.mxu0 %v644
  %758 = vmatprep.subr.mxu0 0.0
  %759 = vmatpush1.msra.mxu0 %v645
  %760 = vmatprep.subr.mxu0 0.0
  %761 = vmatpush1.msra.mxu0 %v646
  %762 = vmatprep.subr.mxu0 0.0
  %763 = vmatpush1.msra.mxu0 %v647
  %764 = vmatprep.subr.mxu0 0.0
  %765 = vmatpush1.msra.mxu0 %v648
  %766 = vmatprep.mubr.f32.mxu0 %v612
  %767 = vmatmul.mubr.f32.gmra.mrb[0].mxu0 %v611
  %v768 = vpop.f32.mrb[0].mxu0
  %v769 = vadd.f32 0.0, %v768
  %v770 = vpop.f32.mrb[0].mxu0
  %771 = vdwg.mxu0
  %772 = vmatprep.subr.mxu0 0.0
  %773 = vmatpush1.msra.mxu0 %v649
  %774 = vmatprep.subr.mxu0 0.0
  %775 = vmatpush1.msra.mxu0 %v650
  %776 = vmatprep.subr.mxu0 0.0
  %777 = vmatpush1.msra.mxu0 %v651
  %778 = vmatprep.subr.mxu0 0.0
  %779 = vmatpush1.msra.mxu0 %v652
  %780 = vmatprep.subr.mxu0 0.0
  %781 = vmatpush1.msra.mxu0 %v653
  %782 = vmatprep.subr.mxu0 0.0
  %783 = vmatpush1.msra.mxu0 %v654
  %784 = vmatprep.subr.mxu0 0.0
  %785 = vmatpush1.msra.mxu0 %v655
  %786 = vmatprep.subr.mxu0 0.0
  %787 = vmatpush1.msra.mxu0 %v656
  %788 = vmatprep.subr.mxu0 0.0
  %789 = vmatpush1.msra.mxu0 %v657
  %790 = vmatprep.subr.mxu0 0.0
  %791 = vmatpush1.msra.mxu0 %v658
  %792 = vmatprep.subr.mxu0 0.0
  %793 = vmatpush1.msra.mxu0 %v659
  %794 = vmatprep.subr.mxu0 0.0
  %795 = vmatpush1.msra.mxu0 %v660
  %796 = vmatprep.subr.mxu0 0.0
  %797 = vmatpush1.msra.mxu0 %v661
  %798 = vmatprep.subr.mxu0 0.0
  %799 = vmatpush1.msra.mxu0 %v662
  %800 = vmatprep.subr.mxu0 0.0
  %801 = vmatpush1.msra.mxu0 %v663
  %802 = vmatprep.subr.mxu0 0.0
  %803 = vmatpush1.msra.mxu0 %v664
  %804 = vmatprep.subr.mxu0 0.0
  %805 = vmatpush1.msra.mxu0 %v665
  %806 = vmatprep.subr.mxu0 0.0
  %807 = vmatpush1.msra.mxu0 %v666
  %808 = vmatprep.subr.mxu0 0.0
  %809 = vmatpush1.msra.mxu0 %v667
  %810 = vmatprep.subr.mxu0 0.0
  %811 = vmatpush1.msra.mxu0 %v668
  %812 = vmatprep.subr.mxu0 0.0
  %813 = vmatpush1.msra.mxu0 %v669
  %814 = vmatprep.subr.mxu0 0.0
  %815 = vmatpush1.msra.mxu0 %v670
  %816 = vmatprep.subr.mxu0 0.0
  %817 = vmatpush1.msra.mxu0 %v671
  %818 = vmatprep.subr.mxu0 0.0
  %819 = vmatpush1.msra.mxu0 %v672
  %820 = vmatprep.subr.mxu0 0.0
  %821 = vmatpush1.msra.mxu0 %v673
  %822 = vmatprep.subr.mxu0 0.0
  %823 = vmatpush1.msra.mxu0 %v674
  %824 = vmatprep.subr.mxu0 0.0
  %825 = vmatpush1.msra.mxu0 %v675
  %826 = vmatprep.subr.mxu0 0.0
  %827 = vmatpush1.msra.mxu0 %v676
  %828 = vmatprep.subr.mxu0 0.0
  %829 = vmatpush1.msra.mxu0 %v677
  %830 = vmatprep.subr.mxu0 0.0
  %831 = vmatpush1.msra.mxu0 %v678
  %832 = vmatprep.subr.mxu0 0.0
  %833 = vmatpush1.msra.mxu0 %v679
  %834 = vmatprep.subr.mxu0 0.0
  %835 = vmatpush1.msra.mxu0 %v680
  %836 = vmatprep.mubr.f32.mxu0 %v614
  %837 = vmatmul.mubr.f32.gmra.mrb[0].mxu0 %v613
  %v838 = vpop.f32.mrb[0].mxu0
  %v839 = vadd.f32 %v769, %v838
  %v840 = vpop.f32.mrb[0].mxu0
  %841 = vdwg.mxu0
  %842 = vmatprep.subr.mxu0 0.0
  %843 = vmatpush1.msra.mxu0 %v681
  %844 = vmatprep.subr.mxu0 0.0
  %845 = vmatpush1.msra.mxu0 %v682
  %846 = vmatprep.subr.mxu0 0.0
  %847 = vmatpush1.msra.mxu0 %v683
  %848 = vmatprep.subr.mxu0 0.0
  %849 = vmatpush1.msra.mxu0 %v684
  %850 = vmatprep.subr.mxu0 0.0
  %851 = vmatpush1.msra.mxu0 %v685
  %852 = vmatprep.subr.mxu0 0.0
  %853 = vmatpush1.msra.mxu0 %v686
  %854 = vmatprep.subr.mxu0 0.0
  %855 = vmatpush1.msra.mxu0 %v687
  %856 = vmatprep.subr.mxu0 0.0
  %857 = vmatpush1.msra.mxu0 %v688
  %858 = vmatprep.subr.mxu0 0.0
  %859 = vmatpush1.msra.mxu0 %v689
  %860 = vmatprep.subr.mxu0 0.0
  %861 = vmatpush1.msra.mxu0 %v690
  %862 = vmatprep.subr.mxu0 0.0
  %863 = vmatpush1.msra.mxu0 %v691
  %864 = vmatprep.subr.mxu0 0.0
  %865 = vmatpush1.msra.mxu0 %v692
  %866 = vmatprep.subr.mxu0 0.0
  %867 = vmatpush1.msra.mxu0 %v693
  %868 = vmatprep.subr.mxu0 0.0
  %869 = vmatpush1.msra.mxu0 %v694
  %870 = vmatprep.subr.mxu0 0.0
  %871 = vmatpush1.msra.mxu0 %v695
  %872 = vmatprep.subr.mxu0 0.0
  %873 = vmatpush1.msra.mxu0 %v696
  %874 = vmatprep.subr.mxu0 0.0
  %875 = vmatpush1.msra.mxu0 %v697
  %876 = vmatprep.subr.mxu0 0.0
  %877 = vmatpush1.msra.mxu0 0.0
  %878 = vmatprep.subr.mxu0 0.0
  %879 = vmatpush1.msra.mxu0 0.0
  %880 = vmatprep.subr.mxu0 0.0
  %881 = vmatpush1.msra.mxu0 0.0
  %882 = vmatprep.subr.mxu0 0.0
  %883 = vmatpush1.msra.mxu0 0.0
  %884 = vmatprep.subr.mxu0 0.0
  %885 = vmatpush1.msra.mxu0 0.0
  %886 = vmatprep.subr.mxu0 0.0
  %887 = vmatpush1.msra.mxu0 0.0
  %888 = vmatprep.subr.mxu0 0.0
  %889 = vmatpush1.msra.mxu0 0.0
  %890 = vmatprep.subr.mxu0 0.0
  %891 = vmatpush1.msra.mxu0 0.0
  %892 = vmatprep.subr.mxu0 0.0
  %893 = vmatpush1.msra.mxu0 0.0
  %894 = vmatprep.subr.mxu0 0.0
  %895 = vmatpush1.msra.mxu0 0.0
  %896 = vmatprep.subr.mxu0 0.0
  %897 = vmatpush1.msra.mxu0 0.0
  %898 = vmatprep.subr.mxu0 0.0
  %899 = vmatpush1.msra.mxu0 0.0
  %900 = vmatprep.subr.mxu0 0.0
  %901 = vmatpush1.msra.mxu0 0.0
  %902 = vmatprep.subr.mxu0 0.0
  %903 = vmatpush1.msra.mxu0 0.0
  %904 = vmatprep.subr.mxu0 0.0
  %905 = vmatpush1.msra.mxu0 0.0
  %906 = vmatprep.mubr.f32.mxu0 %v700
  %907 = vmatmul.mubr.f32.gmra.mrb[0].mxu0 %v615
  %v908 = vpop.f32.mrb[0].mxu0
  %v909 = vadd.f32 %v839, %v908
  %v910 = vpop.f32.mrb[0].mxu0
  %911 = vdwg.mxu0
  %v912 = vld [vmem:[%s3] sm:$0xff]
  %v913 = vld [vmem:[%s3 + $0x8] sm:$0x3]
  %915 = vset.pattern.permute.xlu0 8
  %916 = vperm.xlu0 %915, %v912
  %v917 = vpop.permute.xlu0 %916
  %920 = vset.pattern.permute.xlu0 8
  %921 = vperm.xlu0 %920, %v913
  %v922 = vpop.permute.xlu0 %921
  %v924 = vsel %vm698, %v912, 0
  %v926 = vsel %vm698, %v913, 0
  %928 = vmatprep.subr.mxu0 0.0
  %929 = vmatpush1.msra.mxu0 %v909
  %930 = vmatprep.subr.mxu0 0.0
  %931 = vmatpush1.msra.mxu0 0.0
  %932 = vmatprep.subr.mxu0 0.0
  %933 = vmatpush1.msra.mxu0 0.0
  %934 = vmatprep.subr.mxu0 0.0
  %935 = vmatpush1.msra.mxu0 0.0
  %936 = vmatprep.subr.mxu0 0.0
  %937 = vmatpush1.msra.mxu0 0.0
  %938 = vmatprep.subr.mxu0 0.0
  %939 = vmatpush1.msra.mxu0 0.0
  %940 = vmatprep.subr.mxu0 0.0
  %941 = vmatpush1.msra.mxu0 0.0
  %942 = vmatprep.subr.mxu0 0.0
  %943 = vmatpush1.msra.mxu0 0.0
  %944 = vmatprep.subr.mxu0 0.0
  %945 = vmatpush1.msra.mxu0 0.0
  %946 = vmatprep.subr.mxu0 0.0
  %947 = vmatpush1.msra.mxu0 0.0
  %948 = vmatprep.subr.mxu0 0.0
  %949 = vmatpush1.msra.mxu0 0.0
  %950 = vmatprep.subr.mxu0 0.0
  %951 = vmatpush1.msra.mxu0 0.0
  %952 = vmatprep.subr.mxu0 0.0
  %953 = vmatpush1.msra.mxu0 0.0
  %954 = vmatprep.subr.mxu0 0.0
  %955 = vmatpush1.msra.mxu0 0.0
  %956 = vmatprep.subr.mxu0 0.0
  %957 = vmatpush1.msra.mxu0 0.0
  %958 = vmatprep.subr.mxu0 0.0
  %959 = vmatpush1.msra.mxu0 0.0
  %960 = vmatprep.subr.mxu0 0.0
  %961 = vmatpush1.msra.mxu0 0.0
  %962 = vmatprep.subr.mxu0 0.0
  %963 = vmatpush1.msra.mxu0 0.0
  %964 = vmatprep.subr.mxu0 0.0
  %965 = vmatpush1.msra.mxu0 0.0
  %966 = vmatprep.subr.mxu0 0.0
  %967 = vmatpush1.msra.mxu0 0.0
  %968 = vmatprep.subr.mxu0 0.0
  %969 = vmatpush1.msra.mxu0 0.0
  %970 = vmatprep.subr.mxu0 0.0
  %971 = vmatpush1.msra.mxu0 0.0
  %972 = vmatprep.subr.mxu0 0.0
  %973 = vmatpush1.msra.mxu0 0.0
  %974 = vmatprep.subr.mxu0 0.0
  %975 = vmatpush1.msra.mxu0 0.0
  %976 = vmatprep.subr.mxu0 0.0
  %977 = vmatpush1.msra.mxu0 0.0
  %978 = vmatprep.subr.mxu0 0.0
  %979 = vmatpush1.msra.mxu0 0.0
  %980 = vmatprep.subr.mxu0 0.0
  %981 = vmatpush1.msra.mxu0 0.0
  %982 = vmatprep.subr.mxu0 0.0
  %983 = vmatpush1.msra.mxu0 0.0
  %984 = vmatprep.subr.mxu0 0.0
  %985 = vmatpush1.msra.mxu0 0.0
  %986 = vmatprep.subr.mxu0 0.0
  %987 = vmatpush1.msra.mxu0 0.0
  %988 = vmatprep.subr.mxu0 0.0
  %989 = vmatpush1.msra.mxu0 0.0
  %990 = vmatprep.subr.mxu0 0.0
  %991 = vmatpush1.msra.mxu0 0.0
  %992 = vmatprep.mubr.f32.mxu0 0.0
  %993 = vmatmul.mubr.f32.gmra.mrb[0].mxu0 %v924
  %v994 = vpop.f32.mrb[0].mxu0
  %v995 = vadd.f32 %v917, %v994
  %v996 = vpop.f32.mrb[0].mxu0
  %997 = vmatprep.mubr.f32.mxu0 0.0
  %998 = vmatmul.mubr.f32.gmra.mrb[0].mxu0 %v926
  %v999 = vpop.f32.mrb[0].mxu0
  %v1000 = vadd.f32 %v922, %v999
  %v1001 = vpop.f32.mrb[0].mxu0
  %1002 = vdwg.mxu0
  %vm1003 = vcmask 15360
  %1004 = vst.msk [vmem:[%s4] sm:$0xff] %vm1003, %v995
  %vm1005 = vcmask 9216
  %1006 = vst.msk [vmem:[%s4 + $0x8] sm:$0x3] %vm1005, %v1000
  // Predicated region
  $region18: #{model_wrapper_forward.1} parent=0 // pred_check
    _
  $region19: #{model_wrapper_forward.1} parent=0 // pred_check_branch
    %1008 = sbr.rel (0) target = $region21
  $region20: #{model_wrapper_forward.1} parent=0 // pred_region
    _
  $region21: #{model_wrapper_forward.1} parent=0 // pred_fallthru
    _
  // Predicated region
  $region22: #{model_wrapper_forward.1} parent=0 // pred_check
    _
  $region23: #{model_wrapper_forward.1} parent=0 // pred_check_branch
    %1010 = sbr.rel (0) target = $region25
  $region24: #{model_wrapper_forward.1} parent=0 // pred_region
    _
  $region25: #{model_wrapper_forward.1} parent=0 // pred_fallthru
    _

</llo_original>
